<compile_context>
chip_gen: v6e
topology: v6e:2x2x1
jax: 0.10.0
libtpu: 0.0.40
codegen_flags: <defaults>
</compile_context>

<pallas_src>
import jax
import jax.numpy as jnp
from jax.experimental import pallas as pl
from jax.experimental.pallas import tpu as pltpu

_LANE = 128     # lane width (minor vreg axis) -> batch lives here
_SUBLANE = 8    # f32 sublane granularity -> feature dims padded to this


def _round_up(n, m):
    return ((n + m - 1) // m) * m


def _relunet_kernel(x_ref, *refs):
    """Fused MLP, batch-on-lanes orientation.

    x_ref : (in_pad, TILE_B)                 activations, batch on lanes
    refs  : (Wt0, b0, Wt1, b1, ..., Wtf, bf, out_ref)
            Wt_i : (out_pad_i, in_pad_i)     transposed, zero-padded weights
            b_i  : (out_pad_i, 1)            zero-padded bias (broadcast on lanes)
            out_ref : (out_pad, TILE_B)      lane-dense output tile
    """
    o_ref = refs[-1]
    param_refs = refs[:-1]
    n_layers = len(param_refs) // 2

    h = x_ref[...]                                       # (in_pad, TILE_B) f32
    for li in range(n_layers):                           # static unroll
        wt = param_refs[2 * li][...]                     # (out_pad, in_pad)
        b = param_refs[2 * li + 1][...]                  # (out_pad, 1)
        h = jnp.dot(wt, h, preferred_element_type=jnp.float32) + b
        if li < n_layers - 1:                            # ReLU on all but final
            h = jnp.maximum(h, 0.0)
    o_ref[...] = h.astype(o_ref.dtype)                   # full-lane store


def relunet_forward(x, params, *, max_tile_b=8192, vmem_budget_bytes=16 << 20):
    """Equivalent of ReLUNet.forward(x).

    x:      (B, num_inputs) float32
    params: list of (W, b) with W: (in, out), b: (out,).  Last entry is the
            final layer (no ReLU); all preceding layers are followed by ReLU.
    returns (B, out_dim) float32   (out_dim == 1 for ReLUNet)
    """
    assert x.ndim == 2
    B, num_inputs = x.shape
    out_dim = params[-1][0].shape[1]

    # Feature dims live on the sublane axis: pad to multiples of 8 (f32).
    # Zero padding is exact: padded weight rows/cols are zero, padded biases
    # are zero, relu(0) = 0, and padded output rows are sliced off.
    dims = [num_inputs] + [W.shape[1] for W, _ in params]
    pdims = [_round_up(d, _SUBLANE) for d in dims]
    in_pad, out_pad = pdims[0], pdims[-1]

    # ---- batch tile from a VMEM budget (conservative: v5e's 16 MiB scoped
    # default).  Per batch column: double-buffered in/out tiles plus
    # (conservatively) every unrolled activation, all f32.
    per_col_bytes = 4 * (2 * in_pad + 2 * out_pad + sum(pdims))
    tile_b = vmem_budget_bytes // per_col_bytes
    tile_b = max(_LANE, min(max_tile_b, (tile_b // _LANE) * _LANE))
    tile_b = min(tile_b, _round_up(B, _LANE))
    # Give v7x's 2 TensorCores at least two grid steps when the batch allows
    # it, without shrinking below a size that amortizes per-step overhead.
    while tile_b >= 2048 and _round_up(B, tile_b) // tile_b < 2:
        tile_b //= 2
    tile_b = max(_LANE, (tile_b // _LANE) * _LANE)

    padded_b = _round_up(B, tile_b)
    grid = (padded_b // tile_b,)

    # Batch-on-lanes input: (in_pad, padded_b), zero padded.
    xt = jnp.zeros((in_pad, padded_b), jnp.float32)
    xt = xt.at[:num_inputs, :B].set(x.astype(jnp.float32).T)

    flat_params = []
    in_specs = [pl.BlockSpec((in_pad, tile_b), lambda i: (0, i))]
    for li, (W, b) in enumerate(params):
        ip, op = pdims[li], pdims[li + 1]
        wt = jnp.zeros((op, ip), jnp.float32)
        wt = wt.at[:W.shape[1], :W.shape[0]].set(W.astype(jnp.float32).T)
        bp = jnp.zeros((op, 1), jnp.float32)
        bp = bp.at[:b.shape[0], 0].set(b.astype(jnp.float32))
        flat_params += [wt, bp]
        # Full-array, constant-index blocks -> resident in VMEM across the
        # whole grid.  A few KiB each, so default double-buffering is fine.
        in_specs += [
            pl.BlockSpec(wt.shape, lambda i: (0, 0)),
            pl.BlockSpec(bp.shape, lambda i: (0, 0)),
        ]

    # Advisory cost estimate for XLA's scheduler around the custom call.
    flops = 2 * B * sum(W.shape[0] * W.shape[1] for W, _ in params)
    bytes_accessed = 4 * (xt.size + sum(p.size for p in flat_params)
                          + out_pad * padded_b)

    # Explicit VMEM limit sized from the real per-step footprint (with 2x
    # headroom), bounded so it stays under v7x's 64 MiB physical VMEM.
    param_bytes = 4 * sum(p.size for p in flat_params)
    vmem_per_step = per_col_bytes * tile_b + 2 * param_bytes
    vmem_limit = int(min(48 << 20, max(2 * vmem_per_step, 16 << 20)))

    out = pl.pallas_call(
        _relunet_kernel,
        grid=grid,
        in_specs=in_specs,
        out_specs=pl.BlockSpec((out_pad, tile_b), lambda i: (0, i)),
        out_shape=jax.ShapeDtypeStruct((out_pad, padded_b), jnp.float32),
        compiler_params=pltpu.CompilerParams(
            dimension_semantics=("parallel",),
            vmem_limit_bytes=vmem_limit,
        ),
        cost_estimate=pl.CostEstimate(
            flops=int(flops),
            transcendentals=0,
            bytes_accessed=int(bytes_accessed),
        ),
    )(xt, *flat_params)

    # Back to the PyTorch layout: (B, out_dim).
    return out[:out_dim, :B].T


def _reference_forward(x, params):
    """Pure-JAX reference mirroring the PyTorch ReLUNet.forward."""
    h = x
    n = len(params)
    for i, (W, b) in enumerate(params):
        h = h @ W + b
        if i < n - 1:
            h = jnp.maximum(h, 0.0)
    return h


def _init_params(key, num_inputs, num_layers, width):
    """PyTorch-style Linear init: U(-1/sqrt(fan_in), 1/sqrt(fan_in))."""
    dims = [num_inputs] + [width] * num_layers + [1]
    params = []
    for i in range(len(dims) - 1):
        key, kw, kb = jax.random.split(key, 3)
        bound = 1.0 / (dims[i] ** 0.5)
        W = jax.random.uniform(kw, (dims[i], dims[i + 1]), jnp.float32,
                               -bound, bound)
        b = jax.random.uniform(kb, (dims[i + 1],), jnp.float32, -bound, bound)
        params.append((W, b))
    return params


if __name__ == "__main__":
    key = jax.random.PRNGKey(0)
    num_inputs, num_layers, width = 4, 3, 32

    kx, kp, kx2 = jax.random.split(key, 3)
    params = _init_params(kp, num_inputs, num_layers, width)

    # Small shape (matches the module's intended use).
    batch = 8
    x = jax.random.normal(kx, (batch, num_inputs), dtype=jnp.float32)
    out = jax.block_until_ready(relunet_forward(x, params))
    ref = _reference_forward(x, params)
    assert out.shape == (batch, 1)
    assert jnp.allclose(out, ref, atol=1e-5, rtol=1e-5)

    # Larger, non-multiple batch exercises multi-tile grid + padding removal.
    batch2 = 3000
    x2 = jax.random.normal(kx2, (batch2, num_inputs), dtype=jnp.float32)
    out2 = jax.block_until_ready(relunet_forward(x2, params))
    ref2 = _reference_forward(x2, params)
    assert out2.shape == (batch2, 1)
    assert jnp.allclose(out2, ref2, atol=1e-5, rtol=1e-5)

    print("KERNEL_OK")
</pallas_src>

<mosaic_0001>
module attributes {stable_mosaic.version = 11 : i64} {
  func.func @_relunet_kernel(%arg0: i32, %arg1: memref<8x128xf32, #tpu.memory_space<vmem>>, %arg2: memref<32x8xf32, #tpu.memory_space<vmem>>, %arg3: memref<32x1xf32, #tpu.memory_space<vmem>>, %arg4: memref<32x32xf32, #tpu.memory_space<vmem>>, %arg5: memref<32x1xf32, #tpu.memory_space<vmem>>, %arg6: memref<32x32xf32, #tpu.memory_space<vmem>>, %arg7: memref<32x1xf32, #tpu.memory_space<vmem>>, %arg8: memref<8x32xf32, #tpu.memory_space<vmem>>, %arg9: memref<8x1xf32, #tpu.memory_space<vmem>>, %arg10: memref<8x128xf32, #tpu.memory_space<vmem>>) attributes {dimension_semantics = [#tpu.dimension_semantics<parallel>], iteration_bounds = array<i64: 1>, scalar_prefetch = 0 : i64, scratch_operands = 0 : i64, tpu.core_type = #tpu.core_type<tc>, window_params = [{transform_indices = @transform_0, window_bounds = array<i64: 8, 128>}, {pipeline_mode = #tpu.pipeline_mode<synchronous>, transform_indices = @transform_1, window_bounds = array<i64: 32, 8>}, {pipeline_mode = #tpu.pipeline_mode<synchronous>, transform_indices = @transform_2, window_bounds = array<i64: 32, 1>}, {pipeline_mode = #tpu.pipeline_mode<synchronous>, transform_indices = @transform_3, window_bounds = array<i64: 32, 32>}, {pipeline_mode = #tpu.pipeline_mode<synchronous>, transform_indices = @transform_4, window_bounds = array<i64: 32, 1>}, {pipeline_mode = #tpu.pipeline_mode<synchronous>, transform_indices = @transform_5, window_bounds = array<i64: 32, 32>}, {pipeline_mode = #tpu.pipeline_mode<synchronous>, transform_indices = @transform_6, window_bounds = array<i64: 32, 1>}, {pipeline_mode = #tpu.pipeline_mode<synchronous>, transform_indices = @transform_7, window_bounds = array<i64: 8, 32>}, {pipeline_mode = #tpu.pipeline_mode<synchronous>, transform_indices = @transform_8, window_bounds = array<i64: 8, 1>}, {transform_indices = @transform_9, window_bounds = array<i64: 8, 128>}]} {
    %c0 = arith.constant 0 : index
    %c0_0 = arith.constant 0 : index
    %0 = vector.load %arg1[%c0, %c0_0] : memref<8x128xf32, #tpu.memory_space<vmem>>, vector<8x128xf32>
    %c0_1 = arith.constant 0 : index
    %c0_2 = arith.constant 0 : index
    %1 = vector.load %arg2[%c0_1, %c0_2] : memref<32x8xf32, #tpu.memory_space<vmem>>, vector<32x8xf32>
    %c0_3 = arith.constant 0 : index
    %c0_4 = arith.constant 0 : index
    %2 = vector.load %arg3[%c0_3, %c0_4] : memref<32x1xf32, #tpu.memory_space<vmem>>, vector<32x1xf32>
    %cst = arith.constant dense<0.000000e+00> : vector<32x128xf32>
    %3 = tpu.matmul %1, %0, %cst {dimension_numbers = #tpu.dot_dimension_numbers<[1], [0], [0], [1], [0, 0, 1, 1], [], []>} : vector<32x8xf32>, vector<8x128xf32>, vector<32x128xf32> -> vector<32x128xf32>
    %4 = vector.broadcast %2 : vector<32x1xf32> to vector<32x128xf32>
    %5 = arith.addf %3, %4 : vector<32x128xf32>
    %cst_5 = arith.constant 0.000000e+00 : f32
    %6 = vector.broadcast %cst_5 : f32 to vector<32x128xf32>
    %7 = arith.maximumf %5, %6 : vector<32x128xf32>
    %c0_6 = arith.constant 0 : index
    %c0_7 = arith.constant 0 : index
    %8 = vector.load %arg4[%c0_6, %c0_7] : memref<32x32xf32, #tpu.memory_space<vmem>>, vector<32x32xf32>
    %c0_8 = arith.constant 0 : index
    %c0_9 = arith.constant 0 : index
    %9 = vector.load %arg5[%c0_8, %c0_9] : memref<32x1xf32, #tpu.memory_space<vmem>>, vector<32x1xf32>
    %cst_10 = arith.constant dense<0.000000e+00> : vector<32x128xf32>
    %10 = tpu.matmul %8, %7, %cst_10 {dimension_numbers = #tpu.dot_dimension_numbers<[1], [0], [0], [1], [0, 0, 1, 1], [], []>} : vector<32x32xf32>, vector<32x128xf32>, vector<32x128xf32> -> vector<32x128xf32>
    %11 = vector.broadcast %9 : vector<32x1xf32> to vector<32x128xf32>
    %12 = arith.addf %10, %11 : vector<32x128xf32>
    %cst_11 = arith.constant 0.000000e+00 : f32
    %13 = vector.broadcast %cst_11 : f32 to vector<32x128xf32>
    %14 = arith.maximumf %12, %13 : vector<32x128xf32>
    %c0_12 = arith.constant 0 : index
    %c0_13 = arith.constant 0 : index
    %15 = vector.load %arg6[%c0_12, %c0_13] : memref<32x32xf32, #tpu.memory_space<vmem>>, vector<32x32xf32>
    %c0_14 = arith.constant 0 : index
    %c0_15 = arith.constant 0 : index
    %16 = vector.load %arg7[%c0_14, %c0_15] : memref<32x1xf32, #tpu.memory_space<vmem>>, vector<32x1xf32>
    %cst_16 = arith.constant dense<0.000000e+00> : vector<32x128xf32>
    %17 = tpu.matmul %15, %14, %cst_16 {dimension_numbers = #tpu.dot_dimension_numbers<[1], [0], [0], [1], [0, 0, 1, 1], [], []>} : vector<32x32xf32>, vector<32x128xf32>, vector<32x128xf32> -> vector<32x128xf32>
    %18 = vector.broadcast %16 : vector<32x1xf32> to vector<32x128xf32>
    %19 = arith.addf %17, %18 : vector<32x128xf32>
    %cst_17 = arith.constant 0.000000e+00 : f32
    %20 = vector.broadcast %cst_17 : f32 to vector<32x128xf32>
    %21 = arith.maximumf %19, %20 : vector<32x128xf32>
    %c0_18 = arith.constant 0 : index
    %c0_19 = arith.constant 0 : index
    %22 = vector.load %arg8[%c0_18, %c0_19] : memref<8x32xf32, #tpu.memory_space<vmem>>, vector<8x32xf32>
    %c0_20 = arith.constant 0 : index
    %c0_21 = arith.constant 0 : index
    %23 = vector.load %arg9[%c0_20, %c0_21] : memref<8x1xf32, #tpu.memory_space<vmem>>, vector<8x1xf32>
    %cst_22 = arith.constant dense<0.000000e+00> : vector<8x128xf32>
    %24 = tpu.matmul %22, %21, %cst_22 {dimension_numbers = #tpu.dot_dimension_numbers<[1], [0], [0], [1], [0, 0, 1, 1], [], []>} : vector<8x32xf32>, vector<32x128xf32>, vector<8x128xf32> -> vector<8x128xf32>
    %25 = vector.broadcast %23 : vector<8x1xf32> to vector<8x128xf32>
    %26 = arith.addf %24, %25 : vector<8x128xf32>
    %c0_23 = arith.constant 0 : index
    %c0_24 = arith.constant 0 : index
    %27 = vector.load %arg10[%c0_23, %c0_24] : memref<8x128xf32, #tpu.memory_space<vmem>>, vector<8x128xf32>
    tpu.vector_store %arg10[%c0_23, %c0_24], %26 {strides = array<i32>} : memref<8x128xf32, #tpu.memory_space<vmem>>, vector<8x128xf32>,
    return
  }
  func.func @transform_0(%arg0: i32) -> (i32, i32) {
    %c0_i32 = arith.constant 0 : i32
    %c0_i32_0 = arith.constant 0 : i32
    return %c0_i32, %arg0 : i32, i32
  }
  func.func @transform_1(%arg0: i32) -> (i32, i32) {
    %c0_i32 = arith.constant 0 : i32
    %c0_i32_0 = arith.constant 0 : i32
    %c0_i32_1 = arith.constant 0 : i32
    return %c0_i32, %c0_i32_0 : i32, i32
  }
  func.func @transform_2(%arg0: i32) -> (i32, i32) {
    %c0_i32 = arith.constant 0 : i32
    %c0_i32_0 = arith.constant 0 : i32
    %c0_i32_1 = arith.constant 0 : i32
    return %c0_i32, %c0_i32_0 : i32, i32
  }
  func.func @transform_3(%arg0: i32) -> (i32, i32) {
    %c0_i32 = arith.constant 0 : i32
    %c0_i32_0 = arith.constant 0 : i32
    %c0_i32_1 = arith.constant 0 : i32
    return %c0_i32, %c0_i32_0 : i32, i32
  }
  func.func @transform_4(%arg0: i32) -> (i32, i32) {
    %c0_i32 = arith.constant 0 : i32
    %c0_i32_0 = arith.constant 0 : i32
    %c0_i32_1 = arith.constant 0 : i32
    return %c0_i32, %c0_i32_0 : i32, i32
  }
  func.func @transform_5(%arg0: i32) -> (i32, i32) {
    %c0_i32 = arith.constant 0 : i32
    %c0_i32_0 = arith.constant 0 : i32
    %c0_i32_1 = arith.constant 0 : i32
    return %c0_i32, %c0_i32_0 : i32, i32
  }
  func.func @transform_6(%arg0: i32) -> (i32, i32) {
    %c0_i32 = arith.constant 0 : i32
    %c0_i32_0 = arith.constant 0 : i32
    %c0_i32_1 = arith.constant 0 : i32
    return %c0_i32, %c0_i32_0 : i32, i32
  }
  func.func @transform_7(%arg0: i32) -> (i32, i32) {
    %c0_i32 = arith.constant 0 : i32
    %c0_i32_0 = arith.constant 0 : i32
    %c0_i32_1 = arith.constant 0 : i32
    return %c0_i32, %c0_i32_0 : i32, i32
  }
  func.func @transform_8(%arg0: i32) -> (i32, i32) {
    %c0_i32 = arith.constant 0 : i32
    %c0_i32_0 = arith.constant 0 : i32
    %c0_i32_1 = arith.constant 0 : i32
    return %c0_i32, %c0_i32_0 : i32, i32
  }
  func.func @transform_9(%arg0: i32) -> (i32, i32) {
    %c0_i32 = arith.constant 0 : i32
    %c0_i32_0 = arith.constant 0 : i32
    return %c0_i32, %arg0 : i32, i32
  }
}

</mosaic_0001>

<llo_original>
// kernel: tpu_custom_call.1
$region0: #{tpu_custom_call.1}
  #allocation0 [shape = 'u32[]', space=smem, size = 0x4, offset = 0x4, fixed_abs, tag = 'smem constant byte address 0x4 - core index']
  #allocation1 [shape = 'u32[144,128]{1,0:T(1,128)}', space=vmem, size = 0x12000, scoped, tag = 'internal scratch']
  %s0 = inlined_call_operand.vmem [shape: f32[8,128], index: 0, kind: input, shape index: {}]
  %s1 = inlined_call_operand.vmem [shape: f32[32,8], index: 1, kind: input, shape index: {}]
  %s2 = inlined_call_operand.vmem [shape: f32[32,1], index: 2, kind: input, shape index: {}]
  %s3 = inlined_call_operand.vmem [shape: f32[32,32], index: 3, kind: input, shape index: {}]
  %s4 = inlined_call_operand.vmem [shape: f32[32,1], index: 4, kind: input, shape index: {}]
  %s5 = inlined_call_operand.vmem [shape: f32[32,32], index: 5, kind: input, shape index: {}]
  %s6 = inlined_call_operand.vmem [shape: f32[32,1], index: 6, kind: input, shape index: {}]
  %s7 = inlined_call_operand.vmem [shape: f32[8,32], index: 7, kind: input, shape index: {}]
  %s8 = inlined_call_operand.vmem [shape: f32[8,1], index: 8, kind: input, shape index: {}]
  %s9 = inlined_call_operand.hbm [shape: f32[8,128], index: 9, kind: output, shape index: {}]
  %s10 = sld [smem:[#allocation0]]
  $region46: #{tpu_custom_call.1} parent=0
    _
  %s12 = ssub.s32 1, %s10
  %s13 = scalar_select 0, %s12, %s10
  $region1: #{tpu_custom_call.1} parent=0
    #allocation2 [shape = 'u8[4096]{0}', space=vmem, size = 0x1000, scoped, tag = 'output window, operand 0, single buffered']
    #allocation3 [shape = 's32[1]{0}', space=sflag, size = 0x4, scoped, tag = 'scoped memory for tpu_custom_call.1']
    %14 = vsyncpa [#allocation3], 0
    // Predicated region
    $region2: #{tpu_custom_call.1} parent=1 // pred_check
      _
    $region3: #{tpu_custom_call.1} parent=1 // pred_check_branch
      %16 = sbr.rel (0) target = $region5
    $region4: #{tpu_custom_call.1} parent=1 // pred_region
      _
    $region5: #{tpu_custom_call.1} parent=1 // pred_fallthru
      _
    // Predicated region
    $region6: #{tpu_custom_call.1} parent=1 // pred_check
      _
    $region7: #{tpu_custom_call.1} parent=1 // pred_check_branch
      %18 = sbr.rel (0) target = $region9
    $region8: #{tpu_custom_call.1} parent=1 // pred_region
      _
    $region9: #{tpu_custom_call.1} parent=1 // pred_fallthru
      _
    // Predicated region
    $region10: #{tpu_custom_call.1} parent=1 // pred_check
      _
    $region11: #{tpu_custom_call.1} parent=1 // pred_check_branch
      %20 = sbr.rel (0) target = $region13
    $region12: #{tpu_custom_call.1} parent=1 // pred_region
      _
    $region13: #{tpu_custom_call.1} parent=1 // pred_fallthru
      _
    // Predicated region
    $region14: #{tpu_custom_call.1} parent=1 // pred_check
      _
    $region15: #{tpu_custom_call.1} parent=1 // pred_check_branch
      %22 = sbr.rel (0) target = $region17
    $region16: #{tpu_custom_call.1} parent=1 // pred_region
      _
    $region17: #{tpu_custom_call.1} parent=1 // pred_fallthru
      _
    // Predicated region
    $region18: #{tpu_custom_call.1} parent=1 // pred_check
      _
    $region19: #{tpu_custom_call.1} parent=1 // pred_check_branch
      %24 = sbr.rel (0) target = $region21
    $region20: #{tpu_custom_call.1} parent=1 // pred_region
      _
    $region21: #{tpu_custom_call.1} parent=1 // pred_fallthru
      _
    // Predicated region
    $region22: #{tpu_custom_call.1} parent=1 // pred_check
      _
    $region23: #{tpu_custom_call.1} parent=1 // pred_check_branch
      %26 = sbr.rel (0) target = $region25
    $region24: #{tpu_custom_call.1} parent=1 // pred_region
      _
    $region25: #{tpu_custom_call.1} parent=1 // pred_fallthru
      _
    // Predicated region
    $region26: #{tpu_custom_call.1} parent=1 // pred_check
      _
    $region27: #{tpu_custom_call.1} parent=1 // pred_check_branch
      %28 = sbr.rel (0) target = $region29
    $region28: #{tpu_custom_call.1} parent=1 // pred_region
      _
    $region29: #{tpu_custom_call.1} parent=1 // pred_fallthru
      _
    // Predicated region
    $region30: #{tpu_custom_call.1} parent=1 // pred_check
      _
    $region31: #{tpu_custom_call.1} parent=1 // pred_check_branch
      %30 = sbr.rel (0) target = $region33
    $region32: #{tpu_custom_call.1} parent=1 // pred_region
      _
    $region33: #{tpu_custom_call.1} parent=1 // pred_fallthru
      _
    // Predicated region
    $region34: #{tpu_custom_call.1} parent=1 // pred_check
      _
    $region35: #{tpu_custom_call.1} parent=1 // pred_check_branch
      %32 = sbr.rel (0) target = $region37
    $region36: #{tpu_custom_call.1} parent=1 // pred_region
      _
    $region37: #{tpu_custom_call.1} parent=1 // pred_fallthru
      _
    %v33 = vld [vmem:[%s0] sm:$0xff]
    %v34 = vld [vmem:[%s1] sm:$0xff]
    %v35 = vld [vmem:[%s1 + $0x8] sm:$0xff]
    %v36 = vld [vmem:[%s1 + $0x10] sm:$0xff]
    %v37 = vld [vmem:[%s1 + $0x18] sm:$0xff]
    %v38 = vld [vmem:[%s2] sm:$0xff]
    %v39 = vld [vmem:[%s2 + $0x8] sm:$0xff]
    %v40 = vld [vmem:[%s2 + $0x10] sm:$0xff]
    %v41 = vld [vmem:[%s2 + $0x18] sm:$0xff]
    %43 = vset.pattern.permute.xlu0 0
    %44 = vperm.xlu0 %43, %v38
    %v45 = vpop.permute.xlu0 %44
    %48 = vset.pattern.permute.xlu0 0
    %49 = vperm.xlu0 %48, %v39
    %v50 = vpop.permute.xlu0 %49
    %53 = vset.pattern.permute.xlu0 0
    %54 = vperm.xlu0 %53, %v40
    %v55 = vpop.permute.xlu0 %54
    %58 = vset.pattern.permute.xlu0 0
    %59 = vperm.xlu0 %58, %v41
    %v60 = vpop.permute.xlu0 %59
    %vm62 = vcmask 64512
    %v64 = vsel %vm62, %v34, 0
    %v67 = vsel %vm62, %v35, 0
    %v70 = vsel %vm62, %v36, 0
    %v73 = vsel %vm62, %v37, 0
    %75 = vmatprep.subr.mxu0 0.0
    %76 = vmatpush1.msra.mxu0 0.0
    %77 = vmatprep.subr.mxu0 0.0
    %78 = vmatpush1.msra.mxu0 0.0
    %79 = vmatprep.subr.mxu0 0.0
    %80 = vmatpush1.msra.mxu0 0.0
    %81 = vmatprep.subr.mxu0 0.0
    %82 = vmatpush1.msra.mxu0 0.0
    %83 = vmatprep.subr.mxu0 0.0
    %84 = vmatpush1.msra.mxu0 0.0
    %85 = vmatprep.subr.mxu0 0.0
    %86 = vmatpush1.msra.mxu0 0.0
    %87 = vmatprep.subr.mxu0 0.0
    %88 = vmatpush1.msra.mxu0 0.0
    %89 = vmatprep.subr.mxu0 0.0
    %90 = vmatpush1.msra.mxu0 0.0
    %91 = vmatprep.subr.mxu0 0.0
    %92 = vmatpush1.msra.mxu0 0.0
    %93 = vmatprep.subr.mxu0 0.0
    %94 = vmatpush1.msra.mxu0 0.0
    %95 = vmatprep.subr.mxu0 0.0
    %96 = vmatpush1.msra.mxu0 0.0
    %97 = vmatprep.subr.mxu0 0.0
    %98 = vmatpush1.msra.mxu0 0.0
    %99 = vmatprep.subr.mxu0 0.0
    %100 = vmatpush1.msra.mxu0 0.0
    %101 = vmatprep.subr.mxu0 0.0
    %102 = vmatpush1.msra.mxu0 0.0
    %103 = vmatprep.subr.mxu0 0.0
    %104 = vmatpush1.msra.mxu0 0.0
    %105 = vmatprep.subr.mxu0 0.0
    %106 = vmatpush1.msra.mxu0 %v33
    %107 = vmatprep.subr.mxu0 0.0
    %108 = vmatpush2.msra.mxu0 0.0
    %109 = vmatprep.subr.mxu0 0.0
    %110 = vmatpush2.msra.mxu0 0.0
    %111 = vmatprep.subr.mxu0 0.0
    %112 = vmatpush2.msra.mxu0 0.0
    %113 = vmatprep.subr.mxu0 0.0
    %114 = vmatpush2.msra.mxu0 0.0
    %115 = vmatprep.subr.mxu0 0.0
    %116 = vmatpush2.msra.mxu0 0.0
    %117 = vmatprep.subr.mxu0 0.0
    %118 = vmatpush2.msra.mxu0 0.0
    %119 = vmatprep.subr.mxu0 0.0
    %120 = vmatpush2.msra.mxu0 0.0
    %121 = vmatprep.subr.mxu0 0.0
    %122 = vmatpush2.msra.mxu0 0.0
    %123 = vmatprep.subr.mxu0 0.0
    %124 = vmatpush2.msra.mxu0 0.0
    %125 = vmatprep.subr.mxu0 0.0
    %126 = vmatpush2.msra.mxu0 0.0
    %127 = vmatprep.subr.mxu0 0.0
    %128 = vmatpush2.msra.mxu0 0.0
    %129 = vmatprep.subr.mxu0 0.0
    %130 = vmatpush2.msra.mxu0 0.0
    %131 = vmatprep.subr.mxu0 0.0
    %132 = vmatpush2.msra.mxu0 0.0
    %133 = vmatprep.subr.mxu0 0.0
    %134 = vmatpush2.msra.mxu0 0.0
    %135 = vmatprep.subr.mxu0 0.0
    %136 = vmatpush2.msra.mxu0 0.0
    %137 = vmatprep.subr.mxu0 0.0
    %138 = vmatpush2.msra.mxu0 0.0
    %139 = vmatprep.mubr.f32.mxu0 0.0
    %140 = vmatmul.mubr.f32.gmra.mxu0 %v64
    %v141 = vpop.f32.mrf.mxu0
    %v142 = vadd.f32 %v45, %v141
    %v143 = vpop.f32.mrf.mxu0
    %144 = vmatprep.mubr.f32.mxu0 0.0
    %145 = vmatmul.mubr.f32.gmra.mxu0 %v67
    %v146 = vpop.f32.mrf.mxu0
    %v147 = vadd.f32 %v50, %v146
    %v148 = vpop.f32.mrf.mxu0
    %149 = vmatprep.mubr.f32.mxu0 0.0
    %150 = vmatmul.mubr.f32.gmra.mxu0 %v70
    %v151 = vpop.f32.mrf.mxu0
    %v152 = vadd.f32 %v55, %v151
    %v153 = vpop.f32.mrf.mxu0
    %154 = vmatprep.mubr.f32.mxu0 0.0
    %155 = vmatmul.mubr.f32.gmra.mxu0 %v73
    %v156 = vpop.f32.mrf.mxu0
    %v157 = vadd.f32 %v60, %v156
    %v158 = vpop.f32.mrf.mxu0
    %159 = vdwg.mxu0
    %v160 = vmax.f32 %v142, 0.0
    %v161 = vmax.f32 %v147, 0.0
    %v162 = vmax.f32 %v152, 0.0
    %v163 = vmax.f32 %v157, 0.0
    %v164 = vld [vmem:[%s3] sm:$0xff]
    %v165 = vld [vmem:[%s3 + $0x8] sm:$0xff]
    %v166 = vld [vmem:[%s3 + $0x10] sm:$0xff]
    %v167 = vld [vmem:[%s3 + $0x18] sm:$0xff]
    %v168 = vld [vmem:[%s4] sm:$0xff]
    %v169 = vld [vmem:[%s4 + $0x8] sm:$0xff]
    %v170 = vld [vmem:[%s4 + $0x10] sm:$0xff]
    %v171 = vld [vmem:[%s4 + $0x18] sm:$0xff]
    %173 = vset.pattern.permute.xlu0 0
    %174 = vperm.xlu0 %173, %v168
    %v175 = vpop.permute.xlu0 %174
    %178 = vset.pattern.permute.xlu0 0
    %179 = vperm.xlu0 %178, %v169
    %v180 = vpop.permute.xlu0 %179
    %183 = vset.pattern.permute.xlu0 0
    %184 = vperm.xlu0 %183, %v170
    %v185 = vpop.permute.xlu0 %184
    %188 = vset.pattern.permute.xlu0 0
    %189 = vperm.xlu0 %188, %v171
    %v190 = vpop.permute.xlu0 %189
    %vm192 = vcmask 261120
    %v194 = vsel %vm192, %v164, 0
    %v197 = vsel %vm192, %v165, 0
    %v200 = vsel %vm192, %v166, 0
    %v203 = vsel %vm192, %v167, 0
    %205 = vmatprep.subr.mxu0 0.0
    %206 = vmatpush1.msra.mxu0 0.0
    %207 = vmatprep.subr.mxu0 0.0
    %208 = vmatpush1.msra.mxu0 0.0
    %209 = vmatprep.subr.mxu0 0.0
    %210 = vmatpush1.msra.mxu0 0.0
    %211 = vmatprep.subr.mxu0 0.0
    %212 = vmatpush1.msra.mxu0 0.0
    %213 = vmatprep.subr.mxu0 0.0
    %214 = vmatpush1.msra.mxu0 0.0
    %215 = vmatprep.subr.mxu0 0.0
    %216 = vmatpush1.msra.mxu0 0.0
    %217 = vmatprep.subr.mxu0 0.0
    %218 = vmatpush1.msra.mxu0 0.0
    %219 = vmatprep.subr.mxu0 0.0
    %220 = vmatpush1.msra.mxu0 0.0
    %221 = vmatprep.subr.mxu0 0.0
    %222 = vmatpush1.msra.mxu0 0.0
    %223 = vmatprep.subr.mxu0 0.0
    %224 = vmatpush1.msra.mxu0 0.0
    %225 = vmatprep.subr.mxu0 0.0
    %226 = vmatpush1.msra.mxu0 0.0
    %227 = vmatprep.subr.mxu0 0.0
    %228 = vmatpush1.msra.mxu0 0.0
    %229 = vmatprep.subr.mxu0 0.0
    %230 = vmatpush1.msra.mxu0 %v163
    %231 = vmatprep.subr.mxu0 0.0
    %232 = vmatpush1.msra.mxu0 %v162
    %233 = vmatprep.subr.mxu0 0.0
    %234 = vmatpush1.msra.mxu0 %v161
    %235 = vmatprep.subr.mxu0 0.0
    %236 = vmatpush1.msra.mxu0 %v160
    %237 = vmatprep.subr.mxu0 0.0
    %238 = vmatpush2.msra.mxu0 0.0
    %239 = vmatprep.subr.mxu0 0.0
    %240 = vmatpush2.msra.mxu0 0.0
    %241 = vmatprep.subr.mxu0 0.0
    %242 = vmatpush2.msra.mxu0 0.0
    %243 = vmatprep.subr.mxu0 0.0
    %244 = vmatpush2.msra.mxu0 0.0
    %245 = vmatprep.subr.mxu0 0.0
    %246 = vmatpush2.msra.mxu0 0.0
    %247 = vmatprep.subr.mxu0 0.0
    %248 = vmatpush2.msra.mxu0 0.0
    %249 = vmatprep.subr.mxu0 0.0
    %250 = vmatpush2.msra.mxu0 0.0
    %251 = vmatprep.subr.mxu0 0.0
    %252 = vmatpush2.msra.mxu0 0.0
    %253 = vmatprep.subr.mxu0 0.0
    %254 = vmatpush2.msra.mxu0 0.0
    %255 = vmatprep.subr.mxu0 0.0
    %256 = vmatpush2.msra.mxu0 0.0
    %257 = vmatprep.subr.mxu0 0.0
    %258 = vmatpush2.msra.mxu0 0.0
    %259 = vmatprep.subr.mxu0 0.0
    %260 = vmatpush2.msra.mxu0 0.0
    %261 = vmatprep.subr.mxu0 0.0
    %262 = vmatpush2.msra.mxu0 0.0
    %263 = vmatprep.subr.mxu0 0.0
    %264 = vmatpush2.msra.mxu0 0.0
    %265 = vmatprep.subr.mxu0 0.0
    %266 = vmatpush2.msra.mxu0 0.0
    %267 = vmatprep.subr.mxu0 0.0
    %268 = vmatpush2.msra.mxu0 0.0
    %269 = vmatprep.mubr.f32.mxu0 0.0
    %270 = vmatmul.mubr.f32.gmra.mxu0 %v194
    %v271 = vpop.f32.mrf.mxu0
    %v272 = vadd.f32 %v175, %v271
    %v273 = vpop.f32.mrf.mxu0
    %274 = vmatprep.mubr.f32.mxu0 0.0
    %275 = vmatmul.mubr.f32.gmra.mxu0 %v197
    %v276 = vpop.f32.mrf.mxu0
    %v277 = vadd.f32 %v180, %v276
    %v278 = vpop.f32.mrf.mxu0
    %279 = vmatprep.mubr.f32.mxu0 0.0
    %280 = vmatmul.mubr.f32.gmra.mxu0 %v200
    %v281 = vpop.f32.mrf.mxu0
    %v282 = vadd.f32 %v185, %v281
    %v283 = vpop.f32.mrf.mxu0
    %284 = vmatprep.mubr.f32.mxu0 0.0
    %285 = vmatmul.mubr.f32.gmra.mxu0 %v203
    %v286 = vpop.f32.mrf.mxu0
    %v287 = vadd.f32 %v190, %v286
    %v288 = vpop.f32.mrf.mxu0
    %289 = vdwg.mxu0
    %v290 = vmax.f32 %v272, 0.0
    %v291 = vmax.f32 %v277, 0.0
    %v292 = vmax.f32 %v282, 0.0
    %v293 = vmax.f32 %v287, 0.0
    %v294 = vld [vmem:[%s5] sm:$0xff]
    %v295 = vld [vmem:[%s5 + $0x8] sm:$0xff]
    %v296 = vld [vmem:[%s5 + $0x10] sm:$0xff]
    %v297 = vld [vmem:[%s5 + $0x18] sm:$0xff]
    %v298 = vld [vmem:[%s6] sm:$0xff]
    %v299 = vld [vmem:[%s6 + $0x8] sm:$0xff]
    %v300 = vld [vmem:[%s6 + $0x10] sm:$0xff]
    %v301 = vld [vmem:[%s6 + $0x18] sm:$0xff]
    %303 = vset.pattern.permute.xlu0 0
    %304 = vperm.xlu0 %303, %v298
    %v305 = vpop.permute.xlu0 %304
    %308 = vset.pattern.permute.xlu0 0
    %309 = vperm.xlu0 %308, %v299
    %v310 = vpop.permute.xlu0 %309
    %313 = vset.pattern.permute.xlu0 0
    %314 = vperm.xlu0 %313, %v300
    %v315 = vpop.permute.xlu0 %314
    %318 = vset.pattern.permute.xlu0 0
    %319 = vperm.xlu0 %318, %v301
    %v320 = vpop.permute.xlu0 %319
    %v323 = vsel %vm192, %v294, 0
    %v326 = vsel %vm192, %v295, 0
    %v329 = vsel %vm192, %v296, 0
    %v332 = vsel %vm192, %v297, 0
    %334 = vmatprep.subr.mxu0 0.0
    %335 = vmatpush1.msra.mxu0 0.0
    %336 = vmatprep.subr.mxu0 0.0
    %337 = vmatpush1.msra.mxu0 0.0
    %338 = vmatprep.subr.mxu0 0.0
    %339 = vmatpush1.msra.mxu0 0.0
    %340 = vmatprep.subr.mxu0 0.0
    %341 = vmatpush1.msra.mxu0 0.0
    %342 = vmatprep.subr.mxu0 0.0
    %343 = vmatpush1.msra.mxu0 0.0
    %344 = vmatprep.subr.mxu0 0.0
    %345 = vmatpush1.msra.mxu0 0.0
    %346 = vmatprep.subr.mxu0 0.0
    %347 = vmatpush1.msra.mxu0 0.0
    %348 = vmatprep.subr.mxu0 0.0
    %349 = vmatpush1.msra.mxu0 0.0
    %350 = vmatprep.subr.mxu0 0.0
    %351 = vmatpush1.msra.mxu0 0.0
    %352 = vmatprep.subr.mxu0 0.0
    %353 = vmatpush1.msra.mxu0 0.0
    %354 = vmatprep.subr.mxu0 0.0
    %355 = vmatpush1.msra.mxu0 0.0
    %356 = vmatprep.subr.mxu0 0.0
    %357 = vmatpush1.msra.mxu0 0.0
    %358 = vmatprep.subr.mxu0 0.0
    %359 = vmatpush1.msra.mxu0 %v293
    %360 = vmatprep.subr.mxu0 0.0
    %361 = vmatpush1.msra.mxu0 %v292
    %362 = vmatprep.subr.mxu0 0.0
    %363 = vmatpush1.msra.mxu0 %v291
    %364 = vmatprep.subr.mxu0 0.0
    %365 = vmatpush1.msra.mxu0 %v290
    %366 = vmatprep.subr.mxu0 0.0
    %367 = vmatpush2.msra.mxu0 0.0
    %368 = vmatprep.subr.mxu0 0.0
    %369 = vmatpush2.msra.mxu0 0.0
    %370 = vmatprep.subr.mxu0 0.0
    %371 = vmatpush2.msra.mxu0 0.0
    %372 = vmatprep.subr.mxu0 0.0
    %373 = vmatpush2.msra.mxu0 0.0
    %374 = vmatprep.subr.mxu0 0.0
    %375 = vmatpush2.msra.mxu0 0.0
    %376 = vmatprep.subr.mxu0 0.0
    %377 = vmatpush2.msra.mxu0 0.0
    %378 = vmatprep.subr.mxu0 0.0
    %379 = vmatpush2.msra.mxu0 0.0
    %380 = vmatprep.subr.mxu0 0.0
    %381 = vmatpush2.msra.mxu0 0.0
    %382 = vmatprep.subr.mxu0 0.0
    %383 = vmatpush2.msra.mxu0 0.0
    %384 = vmatprep.subr.mxu0 0.0
    %385 = vmatpush2.msra.mxu0 0.0
    %386 = vmatprep.subr.mxu0 0.0
    %387 = vmatpush2.msra.mxu0 0.0
    %388 = vmatprep.subr.mxu0 0.0
    %389 = vmatpush2.msra.mxu0 0.0
    %390 = vmatprep.subr.mxu0 0.0
    %391 = vmatpush2.msra.mxu0 0.0
    %392 = vmatprep.subr.mxu0 0.0
    %393 = vmatpush2.msra.mxu0 0.0
    %394 = vmatprep.subr.mxu0 0.0
    %395 = vmatpush2.msra.mxu0 0.0
    %396 = vmatprep.subr.mxu0 0.0
    %397 = vmatpush2.msra.mxu0 0.0
    %398 = vmatprep.mubr.f32.mxu0 0.0
    %399 = vmatmul.mubr.f32.gmra.mxu0 %v323
    %v400 = vpop.f32.mrf.mxu0
    %v401 = vadd.f32 %v305, %v400
    %v402 = vpop.f32.mrf.mxu0
    %403 = vmatprep.mubr.f32.mxu0 0.0
    %404 = vmatmul.mubr.f32.gmra.mxu0 %v326
    %v405 = vpop.f32.mrf.mxu0
    %v406 = vadd.f32 %v310, %v405
    %v407 = vpop.f32.mrf.mxu0
    %408 = vmatprep.mubr.f32.mxu0 0.0
    %409 = vmatmul.mubr.f32.gmra.mxu0 %v329
    %v410 = vpop.f32.mrf.mxu0
    %v411 = vadd.f32 %v315, %v410
    %v412 = vpop.f32.mrf.mxu0
    %413 = vmatprep.mubr.f32.mxu0 0.0
    %414 = vmatmul.mubr.f32.gmra.mxu0 %v332
    %v415 = vpop.f32.mrf.mxu0
    %v416 = vadd.f32 %v320, %v415
    %v417 = vpop.f32.mrf.mxu0
    %418 = vdwg.mxu0
    %v419 = vmax.f32 %v401, 0.0
    %v420 = vmax.f32 %v406, 0.0
    %v421 = vmax.f32 %v411, 0.0
    %v422 = vmax.f32 %v416, 0.0
    %v423 = vld [vmem:[%s7] sm:$0xff]
    %v424 = vld [vmem:[%s8] sm:$0xff]
    %426 = vset.pattern.permute.xlu0 0
    %427 = vperm.xlu0 %426, %v424
    %v428 = vpop.permute.xlu0 %427
    %v431 = vsel %vm192, %v423, 0
    %433 = vmatprep.subr.mxu0 0.0
    %434 = vmatpush1.msra.mxu0 0.0
    %435 = vmatprep.subr.mxu0 0.0
    %436 = vmatpush1.msra.mxu0 0.0
    %437 = vmatprep.subr.mxu0 0.0
    %438 = vmatpush1.msra.mxu0 0.0
    %439 = vmatprep.subr.mxu0 0.0
    %440 = vmatpush1.msra.mxu0 0.0
    %441 = vmatprep.subr.mxu0 0.0
    %442 = vmatpush1.msra.mxu0 0.0
    %443 = vmatprep.subr.mxu0 0.0
    %444 = vmatpush1.msra.mxu0 0.0
    %445 = vmatprep.subr.mxu0 0.0
    %446 = vmatpush1.msra.mxu0 0.0
    %447 = vmatprep.subr.mxu0 0.0
    %448 = vmatpush1.msra.mxu0 0.0
    %449 = vmatprep.subr.mxu0 0.0
    %450 = vmatpush1.msra.mxu0 0.0
    %451 = vmatprep.subr.mxu0 0.0
    %452 = vmatpush1.msra.mxu0 0.0
    %453 = vmatprep.subr.mxu0 0.0
    %454 = vmatpush1.msra.mxu0 0.0
    %455 = vmatprep.subr.mxu0 0.0
    %456 = vmatpush1.msra.mxu0 0.0
    %457 = vmatprep.subr.mxu0 0.0
    %458 = vmatpush1.msra.mxu0 %v422
    %459 = vmatprep.subr.mxu0 0.0
    %460 = vmatpush1.msra.mxu0 %v421
    %461 = vmatprep.subr.mxu0 0.0
    %462 = vmatpush1.msra.mxu0 %v420
    %463 = vmatprep.subr.mxu0 0.0
    %464 = vmatpush1.msra.mxu0 %v419
    %465 = vmatprep.subr.mxu0 0.0
    %466 = vmatpush2.msra.mxu0 0.0
    %467 = vmatprep.subr.mxu0 0.0
    %468 = vmatpush2.msra.mxu0 0.0
    %469 = vmatprep.subr.mxu0 0.0
    %470 = vmatpush2.msra.mxu0 0.0
    %471 = vmatprep.subr.mxu0 0.0
    %472 = vmatpush2.msra.mxu0 0.0
    %473 = vmatprep.subr.mxu0 0.0
    %474 = vmatpush2.msra.mxu0 0.0
    %475 = vmatprep.subr.mxu0 0.0
    %476 = vmatpush2.msra.mxu0 0.0
    %477 = vmatprep.subr.mxu0 0.0
    %478 = vmatpush2.msra.mxu0 0.0
    %479 = vmatprep.subr.mxu0 0.0
    %480 = vmatpush2.msra.mxu0 0.0
    %481 = vmatprep.subr.mxu0 0.0
    %482 = vmatpush2.msra.mxu0 0.0
    %483 = vmatprep.subr.mxu0 0.0
    %484 = vmatpush2.msra.mxu0 0.0
    %485 = vmatprep.subr.mxu0 0.0
    %486 = vmatpush2.msra.mxu0 0.0
    %487 = vmatprep.subr.mxu0 0.0
    %488 = vmatpush2.msra.mxu0 0.0
    %489 = vmatprep.subr.mxu0 0.0
    %490 = vmatpush2.msra.mxu0 0.0
    %491 = vmatprep.subr.mxu0 0.0
    %492 = vmatpush2.msra.mxu0 0.0
    %493 = vmatprep.subr.mxu0 0.0
    %494 = vmatpush2.msra.mxu0 0.0
    %495 = vmatprep.subr.mxu0 0.0
    %496 = vmatpush2.msra.mxu0 0.0
    %497 = vmatprep.mubr.f32.mxu0 0.0
    %498 = vmatmul.mubr.f32.gmra.mxu0 %v431
    %v499 = vpop.f32.mrf.mxu0
    %v500 = vadd.f32 %v428, %v499
    %v501 = vpop.f32.mrf.mxu0
    %502 = vdwg.mxu0
    %503 = vst [vmem:[#allocation2] sm:$0xff] %v500
    // Predicated region
    $region38: #{tpu_custom_call.1} parent=1 // pred_check
      _
    $region39: #{tpu_custom_call.1} parent=1 // pred_check_branch
      %505 = sbr.rel (0) target = $region41
    $region40: #{tpu_custom_call.1} parent=1 // pred_region
      %s507 = ssub.s32 128, 128
      %508 = vsyncadd [#allocation3], %s507
      %s510 = sshll.u32 [#allocation2], 4
      %s511 = int_to_ptr.vmem [resolvable:$true] %s510
      %513 = dma.vmem_to_hbm [thread:$0]  %s511, 128, %s9, [#allocation3]
    $region41: #{tpu_custom_call.1} parent=1 // pred_fallthru
      _
    // Predicated region
    $region42: #{tpu_custom_call.1} parent=1 // pred_check
      _
    $region43: #{tpu_custom_call.1} parent=1 // pred_check_branch
      %515 = sbr.rel (0) target = $region45
    $region44: #{tpu_custom_call.1} parent=1 // pred_region
      %516 = dma.done [#allocation3], 128
    $region45: #{tpu_custom_call.1} parent=1 // pred_fallthru
      _
    %517 = vsyncpa [#allocation3], 1

</llo_original>
